<compile_context>
chip_gen: v5e
topology: v5e:2x2
jax: 0.10.0
libtpu: 0.0.40
codegen_flags: <defaults>
</compile_context>

<pallas_src>
import functools

import jax
import jax.numpy as jnp
from jax.experimental import pallas as pl
from jax.experimental.pallas import tpu as pltpu


def _implicit_kernel(x_ref, w_ref, o_ref, *, ops: str):
    # x_ref: (Rt, Lt) data tile; w_ref: (Rt, 1) per-(n,c) values on the sublane
    # axis, broadcast along lanes by the VPU.
    x = x_ref[...]
    w = w_ref[...]
    y = x + w if ops == "add" else x * w
    o_ref[...] = y.astype(o_ref.dtype)


def _vmem_plan() -> tuple:
    """Per-generation (vmem_limit_bytes, block_bytes_cap).

    v5e/v6e (128 MiB physical VMEM): 64 MiB scoped limit, ~12.8 MiB blocks.
    v7x     ( 64 MiB physical VMEM): 40 MiB scoped limit,   8  MiB blocks.
    Double-buffered in + out = 4 blocks stays comfortably inside the limit.
    """
    phys = 64 << 20  # conservative fallback = v7x physical VMEM
    try:
        phys = int(getattr(pltpu.get_tpu_info(), "vmem_capacity_bytes", phys))
    except Exception:
        pass
    vmem_limit = min(phys * 5 // 8, 64 << 20)
    block_cap = max(4 << 20, vmem_limit // 5)
    return vmem_limit, block_cap


def _pick_tiles(R: int, L: int, itemsize: int, block_cap: int) -> tuple:
    """Choose (Rt, Lt) for the flattened (R=N*C, L=H*W) view.

    Grow the lane tile first (large multiple of 128; masked edge tile is fine),
    then the row tile (multiple of the dtype's sublane packing), up to
    block_cap bytes per block.  Full-dim tiles are used when they fit.
    """
    pack = 8 * max(1, 4 // max(1, itemsize))  # 8 f32 / 16 bf16 / 32 int8-fp8
    ct_base = min(pack, R)

    max_lt = max(128, block_cap // max(1, ct_base * itemsize))
    if L <= max_lt:
        lt = L                                 # full dim (always legal)
    else:
        lt = max(128, (max_lt // 128) * 128)   # lane-dense tile, masked edge

    max_ct = max(ct_base, block_cap // max(1, lt * itemsize))
    if R <= max_ct:
        ct = R                                 # full dim (always legal)
    else:
        ct = max(pack, (max_ct // pack) * pack)
    return ct, lt


def implicit_forward(x: jax.Array, implicit: jax.Array, ops: str = "add",
                     donate_x: bool = False) -> jax.Array:
    """Apply the Implicit op: broadcast-add or broadcast-mul of a (1,C,1,1) param."""
    assert ops in ("add", "multiply")
    N, C, H, W = x.shape
    assert implicit.shape == (1, C, 1, 1)

    R, L = N * C, H * W
    itemsize = jnp.dtype(x.dtype).itemsize

    x2 = x.reshape(R, L)  # (batch*channel) on sublanes, lane-dense spatial axis
    # Pre-broadcast the per-channel parameter across the batch (bytes only) and
    # match the activation dtype so the kernel does no implicit f32 promotion.
    w2 = jnp.broadcast_to(implicit.reshape(1, C), (N, C)).reshape(R, 1).astype(x.dtype)

    vmem_limit, block_cap = _vmem_plan()
    ct, lt = _pick_tiles(R, L, itemsize, block_cap)
    grid = (pl.cdiv(R, ct), pl.cdiv(L, lt))

    kernel = functools.partial(_implicit_kernel, ops=ops)

    out = pl.pallas_call(
        kernel,
        out_shape=jax.ShapeDtypeStruct((R, L), x.dtype),
        grid_spec=pltpu.PrefetchScalarGridSpec(
            num_scalar_prefetch=0,
            grid=grid,
            in_specs=[
                pl.BlockSpec((ct, lt), lambda r, l: (r, l)),
                # Tiny (ct, 1) param tile; its block index is constant across
                # the inner L axis, so the DMA only re-issues when the row tile
                # changes (effectively resident in steady state).
                pl.BlockSpec((ct, 1), lambda r, l: (r, 0)),
            ],
            out_specs=pl.BlockSpec((ct, lt), lambda r, l: (r, l)),
        ),
        compiler_params=pltpu.CompilerParams(
            dimension_semantics=("parallel", "parallel"),
            vmem_limit_bytes=vmem_limit,
        ),
        cost_estimate=pl.CostEstimate(
            flops=R * L,
            transcendentals=0,
            bytes_accessed=(2 * R * L + R) * itemsize,
        ),
        # x and the output share (R, L) shape/dtype; aliasing halves the HBM
        # footprint when the caller can donate x (off by default).
        input_output_aliases=({0: 0} if donate_x else {}),
    )(x2, w2)
    return out.reshape(N, C, H, W)


def init_implicit_param(key, channel: int, ops: str = "add",
                        mean=None, std: float = 0.02) -> jax.Array:
    """Mirror PyTorch __init__: normal(mean, std), mean defaulting to 0 (add) / 1 (multiply)."""
    m = mean if mean is not None else (0.0 if ops == "add" else 1.0)
    return m + std * jax.random.normal(key, (1, channel, 1, 1), dtype=jnp.float32)


if __name__ == "__main__":
    key = jax.random.PRNGKey(0)
    k_x, k_add, k_mul, k_x2 = jax.random.split(key, 4)

    # Small shape consistent with the module (batch=2, channels=4, spatial=16).
    N, C, H, W = 2, 4, 16, 16
    x = jax.random.normal(k_x, (N, C, H, W), dtype=jnp.float32)

    # ops='add'
    w_add = init_implicit_param(k_add, C, ops="add")
    y_add = jax.block_until_ready(implicit_forward(x, w_add, ops="add"))
    assert jnp.allclose(y_add, x + w_add, atol=1e-6), "add mismatch"

    # ops='multiply'
    w_mul = init_implicit_param(k_mul, C, ops="multiply")
    y_mul = jax.block_until_ready(implicit_forward(x, w_mul, ops="multiply"))
    assert jnp.allclose(y_mul, x * w_mul, atol=1e-6), "multiply mismatch"

    # Extra check: larger channel count (sublane-packed path) + bf16 dtype handling.
    N2, C2, H2, W2 = 2, 16, 16, 16
    x_bf16 = jax.random.normal(k_x2, (N2, C2, H2, W2), dtype=jnp.float32).astype(jnp.bfloat16)
    w_bf = init_implicit_param(k_add, C2, ops="add")
    y_bf = jax.block_until_ready(implicit_forward(x_bf16, w_bf, ops="add"))
    ref_bf = x_bf16 + w_bf.astype(jnp.bfloat16)
    assert y_bf.dtype == jnp.bfloat16, "output dtype must match input dtype"
    assert jnp.allclose(y_bf.astype(jnp.float32), ref_bf.astype(jnp.float32), atol=1e-2), "bf16 add mismatch"

    print("KERNEL_OK")
</pallas_src>

<mosaic_0001>
module attributes {stable_mosaic.version = 11 : i64} {
  func.func @_implicit_kernel(%arg0: i32, %arg1: i32, %arg2: memref<8x256xf32, #tpu.memory_space<vmem>>, %arg3: memref<8x1xf32, #tpu.memory_space<vmem>>, %arg4: memref<8x256xf32, #tpu.memory_space<vmem>>) attributes {dimension_semantics = [#tpu.dimension_semantics<parallel>, #tpu.dimension_semantics<parallel>], iteration_bounds = array<i64: 1, 1>, scalar_prefetch = 0 : i64, scratch_operands = 0 : i64, tpu.core_type = #tpu.core_type<tc>, window_params = [{transform_indices = @transform_0, window_bounds = array<i64: 8, 256>}, {transform_indices = @transform_1, window_bounds = array<i64: 8, 1>}, {transform_indices = @transform_2, window_bounds = array<i64: 8, 256>}]} {
    %c0 = arith.constant 0 : index
    %c0_0 = arith.constant 0 : index
    %0 = vector.load %arg2[%c0, %c0_0] : memref<8x256xf32, #tpu.memory_space<vmem>>, vector<8x256xf32>
    %c0_1 = arith.constant 0 : index
    %c0_2 = arith.constant 0 : index
    %1 = vector.load %arg3[%c0_1, %c0_2] : memref<8x1xf32, #tpu.memory_space<vmem>>, vector<8x1xf32>
    %2 = vector.broadcast %1 : vector<8x1xf32> to vector<8x256xf32>
    %3 = arith.addf %0, %2 : vector<8x256xf32>
    %c0_3 = arith.constant 0 : index
    %c0_4 = arith.constant 0 : index
    %4 = vector.load %arg4[%c0_3, %c0_4] : memref<8x256xf32, #tpu.memory_space<vmem>>, vector<8x256xf32>
    tpu.vector_store %arg4[%c0_3, %c0_4], %3 {strides = array<i32>} : memref<8x256xf32, #tpu.memory_space<vmem>>, vector<8x256xf32>,
    return
  }
  func.func @transform_0(%arg0: i32, %arg1: i32) -> (i32, i32) {
    %c0_i32 = arith.constant 0 : i32
    return %arg0, %arg1 : i32, i32
  }
  func.func @transform_1(%arg0: i32, %arg1: i32) -> (i32, i32) {
    %c0_i32 = arith.constant 0 : i32
    %c0_i32_0 = arith.constant 0 : i32
    return %arg0, %c0_i32 : i32, i32
  }
  func.func @transform_2(%arg0: i32, %arg1: i32) -> (i32, i32) {
    %c0_i32 = arith.constant 0 : i32
    return %arg0, %arg1 : i32, i32
  }
}

</mosaic_0001>

<llo_original>
// kernel: tpu_custom_call.1
$region0: #{tpu_custom_call.1}
  #allocation0 [shape = 'u32[]', space=smem, size = 0x4, offset = 0x4, fixed_abs, tag = 'smem constant byte address 0x4 - core index']
  #allocation1 [shape = 'u32[72,128]{1,0:T(1,128)}', space=vmem, size = 0x9000, scoped, tag = 'internal scratch']
  %s0 = inlined_call_operand.hbm [shape: f32[8,256], index: 0, kind: input, shape index: {}]
  %s1 = inlined_call_operand.vmem [shape: f32[8,1], index: 1, kind: input, shape index: {}]
  %s2 = inlined_call_operand.hbm [shape: f32[8,256], index: 2, kind: output, shape index: {}]
  %s3 = sld [smem:[#allocation0]]
  $region22: #{tpu_custom_call.1} parent=0
    _
  %s5 = ssub.s32 1, %s3
  %s6 = scalar_select 0, %s5, %s3
  $region1: #{tpu_custom_call.1} parent=0
    #allocation2 [shape = 'u8[8192]{0}', space=vmem, size = 0x2000, scoped, tag = 'input window, operand 0, single buffered']
    #allocation3 [shape = 's32[1]{0}', space=sflag, size = 0x4, scoped, tag = 'scoped memory for tpu_custom_call.1']
    #allocation4 [shape = 's32[1]{0}', space=sflag, size = 0x4, scoped, tag = 'scoped memory for tpu_custom_call.1']
    #allocation5 [shape = 'u8[8192]{0}', space=vmem, size = 0x2000, scoped, tag = 'output window, operand 0, single buffered']
    %7 = vsyncpa [#allocation3], 0
    %8 = vsyncpa [#allocation4], 0
    // Predicated region
    $region2: #{tpu_custom_call.1} parent=1 // pred_check
      _
    $region3: #{tpu_custom_call.1} parent=1 // pred_check_branch
      %10 = sbr.rel (0) target = $region5
    $region4: #{tpu_custom_call.1} parent=1 // pred_region
      %12 = vsyncadd [#allocation3], 0
      %s14 = sshll.u32 %s0, 4
      %s15 = int_to_ptr.hbm [resolvable:$true] %s14
      %s16 = sshll.u32 [#allocation2], 4
      %s17 = int_to_ptr.vmem [resolvable:$true] %s16
      %19 = dma.hbm_to_vmem [thread:$0]  %s15, 256, %s17, [#allocation3]
    $region5: #{tpu_custom_call.1} parent=1 // pred_fallthru
      _
    // Predicated region
    $region6: #{tpu_custom_call.1} parent=1 // pred_check
      _
    $region7: #{tpu_custom_call.1} parent=1 // pred_check_branch
      %21 = sbr.rel (0) target = $region9
    $region8: #{tpu_custom_call.1} parent=1 // pred_region
      _
    $region9: #{tpu_custom_call.1} parent=1 // pred_fallthru
      _
    // Predicated region
    $region10: #{tpu_custom_call.1} parent=1 // pred_check
      _
    $region11: #{tpu_custom_call.1} parent=1 // pred_check_branch
      %23 = sbr.rel (0) target = $region13
    $region12: #{tpu_custom_call.1} parent=1 // pred_region
      %25 = dma.done [#allocation3], 256
    $region13: #{tpu_custom_call.1} parent=1 // pred_fallthru
      _
    %v26 = vld [vmem:[#allocation2] sm:$0xff]
    %v27 = vld [vmem:[#allocation2 + $0x8] sm:$0xff]
    %v28 = vld [vmem:[%s1] sm:$0xff]
    %30 = vset.pattern.permute.xlu0 0
    %31 = vperm.xlu0 %30, %v28
    %v32 = vpop.permute.xlu0 %31
    %v34 = vadd.f32 %v26, %v32
    %v35 = vadd.f32 %v27, %v32
    %36 = vst [vmem:[#allocation5] sm:$0xff] %v34
    %37 = vst [vmem:[#allocation5 + $0x8] sm:$0xff] %v35
    // Predicated region
    $region14: #{tpu_custom_call.1} parent=1 // pred_check
      _
    $region15: #{tpu_custom_call.1} parent=1 // pred_check_branch
      %39 = sbr.rel (0) target = $region17
    $region16: #{tpu_custom_call.1} parent=1 // pred_region
      %41 = vsyncadd [#allocation4], 0
      %s43 = sshll.u32 [#allocation5], 4
      %s44 = int_to_ptr.vmem [resolvable:$true] %s43
      %s45 = sshll.u32 %s2, 4
      %s46 = int_to_ptr.hbm [resolvable:$true] %s45
      %48 = dma.vmem_to_hbm [thread:$0]  %s44, 256, %s46, [#allocation4]
    $region17: #{tpu_custom_call.1} parent=1 // pred_fallthru
      _
    // Predicated region
    $region18: #{tpu_custom_call.1} parent=1 // pred_check
      _
    $region19: #{tpu_custom_call.1} parent=1 // pred_check_branch
      %50 = sbr.rel (0) target = $region21
    $region20: #{tpu_custom_call.1} parent=1 // pred_region
      %52 = dma.done [#allocation4], 256
    $region21: #{tpu_custom_call.1} parent=1 // pred_fallthru
      _
    %53 = vsyncpa [#allocation3], 1
    %54 = vsyncpa [#allocation4], 1

</llo_original>
